<compile_context>
chip_gen: v7x
topology: tpu7x:2x2x1
jax: 0.10.0
libtpu: 0.0.40
codegen_flags: <defaults>
</compile_context>

<pallas_src>
import jax
import jax.numpy as jnp
from jax.experimental import pallas as pl
from jax.experimental.pallas import tpu as pltpu

LANE = 128
SUBLANE = 8
MIN_BLOCK_ROWS = 512        # 256 KiB f32 per stream -- below this, one block.
MAX_BLOCK_ROWS = 8192       # 4 MiB f32 per stream per buffer.
BLOCK_ROW_ALIGN = 32        # multiple of the min sublane tile for f32/bf16/int8.
TARGET_GRID_STEPS = 8       # >= 4 steps per TensorCore on v7x megacore.
VMEM_LIMIT_BYTES = 48 << 20 # 3 streams x 2 buffers x 4 MiB = 24 MiB, + headroom;
                            # fits v5e/v6e (128 MiB) and v7x (64 MiB per TC).


def _round_up(n, m):
    return -(-n // m) * m


def _block_rows_for(rows):
    """Pick a lane-dense block height: big enough to amortize per-step overhead,
    small enough to give >= TARGET_GRID_STEPS grid steps on large tensors."""
    br = _round_up(pl.cdiv(rows, TARGET_GRID_STEPS), BLOCK_ROW_ALIGN)
    br = max(MIN_BLOCK_ROWS, min(MAX_BLOCK_ROWS, br))
    return min(br, rows)


def _gate_event_kernel(x_ref, b_ref, p_ref):
    """Event step for policy=None: p = d + (x - b) with d == 0  =>  p = x - b."""
    p_ref[...] = x_ref[...] - b_ref[...]
    # TODO(synk): count_mode statistics (count_nonzero -> host-side Python counters)
    # and a user-supplied `policy` callable are not part of the tensor math here.


def _event_step_pallas(x2d, b2d, block_rows):
    rows = x2d.shape[0]
    grid = (pl.cdiv(rows, block_rows),)
    spec = pl.BlockSpec((block_rows, LANE), lambda i: (i, 0))
    nbytes = x2d.size * x2d.dtype.itemsize
    return pl.pallas_call(
        _gate_event_kernel,
        grid=grid,
        in_specs=[spec, spec],
        out_specs=spec,
        out_shape=jax.ShapeDtypeStruct(x2d.shape, x2d.dtype),
        compiler_params=pltpu.CompilerParams(
            dimension_semantics=("parallel",),
            vmem_limit_bytes=VMEM_LIMIT_BYTES,
        ),
        cost_estimate=pl.CostEstimate(
            flops=x2d.size, transcendentals=0, bytes_accessed=3 * nbytes),
    )(x2d, b2d)


@jax.jit
def _gate_event_jit(x, b):
    """Jitted event step: bitcast reshapes around a single Pallas subtract."""
    rows = x.size // LANE
    block_rows = _block_rows_for(rows)
    x2d = jnp.reshape(x, (rows, LANE))
    b2d = jnp.reshape(b, (rows, LANE))
    p2d = _event_step_pallas(x2d, b2d, block_rows)
    return jnp.reshape(p2d, x.shape)


class Gate:
    """JAX/Pallas port of eventnn Gate (policy=None). State held as jnp arrays.

    Note: state as Python attributes is not jit/scan-compatible; a functional
    (x, state) -> (p, state) API would be preferable inside a jitted loop.
    """

    def __init__(self, min_pallas_size=1 << 15):
        self.event_mode = True
        self.memory_loss_mode = False
        self.count_mode = False
        self.policy = None
        self.first = True
        self.b = None
        self._d = None
        self.min_pallas_size = min_pallas_size

    # d is identically zero on this path; materialize lazily only if inspected.
    @property
    def d(self):
        if self._d is None and self.b is not None:
            self._d = jnp.zeros_like(self.b)
        return self._d

    @d.setter
    def d(self, value):
        self._d = value

    def reset(self):
        self.first = True
        self.b = None
        self._d = None

    def __call__(self, x):
        if not self.event_mode:
            return x
        if self.first:
            return self._forward_flush(x)
        return self._forward_event(x)

    def _forward_flush(self, x):
        # Flush: pure reference copy, no HBM traffic, no kernel launch.
        self.first = False
        self.b = x
        self._d = None
        # TODO(synk): count_mode 'event_load/store' bookkeeping not implemented.
        return x

    def _use_pallas(self, x):
        b = self.b
        if x.shape != b.shape or x.dtype != b.dtype:
            return False
        if x.size < self.min_pallas_size:
            # Tiny tensors: dispatch overhead dwarfs one subtract; let XLA fuse it.
            return False
        if x.size % LANE:
            return False
        rows = x.size // LANE
        # Minimum sublane tile: f32 -> 8 rows, bf16 -> 16, int8/fp8 -> 32.
        row_align = SUBLANE * max(1, 4 // x.dtype.itemsize)
        return rows % row_align == 0

    def _forward_event(self, x):
        if self._use_pallas(x):
            p = _gate_event_jit(x, self.b)
        else:
            # Unaligned or tiny: fused XLA subtract is already at HBM roofline and
            # avoids any pad / slice round trips.
            p = x - self.b
        # State update: b <- x by reference; d stays identically 0 (lazy).
        self.b = x
        self._d = None
        return p


if __name__ == "__main__":
    key = jax.random.PRNGKey(0)
    keys = jax.random.split(key, 12)

    # --- Pallas path on the module's natural small NCHW shape ---------------
    shape = (2, 4, 16, 16)  # NCHW, 2048 elements -> rows=16, single-block grid
    x1 = jax.random.normal(keys[0], shape, dtype=jnp.float32)
    x2 = jax.random.normal(keys[1], shape, dtype=jnp.float32)
    x3 = jax.random.normal(keys[2], shape, dtype=jnp.float32)

    gate = Gate(min_pallas_size=0)  # force the Pallas kernel even at this small size

    y1 = gate(x1)                   # flush: returns x1, b=x1, d=0
    jax.block_until_ready(y1)
    assert jnp.allclose(y1, x1), "flush output mismatch"
    assert jnp.allclose(gate.b, x1) and jnp.allclose(gate.d, 0.0)

    p2 = gate(x2)                   # event: p = x2 - x1
    jax.block_until_ready(p2)
    assert jnp.allclose(p2, x2 - x1, atol=1e-6), "event step 1 mismatch"
    assert jnp.allclose(gate.b, x2)

    p3 = gate(x3)                   # event: p = x3 - x2
    jax.block_until_ready(p3)
    assert jnp.allclose(p3, x3 - x2, atol=1e-6), "event step 2 mismatch"

    # --- larger aligned shape: multi-step grid (rows=4096, block=512, grid=8) ----
    big_shape = (8, 64, 32, 32)     # 524288 elements
    b1 = jax.random.normal(keys[3], big_shape, dtype=jnp.float32)
    b2 = jax.random.normal(keys[4], big_shape, dtype=jnp.float32)
    gate_big = Gate(min_pallas_size=0)
    _ = gate_big(b1)
    q2 = gate_big(b2)
    jax.block_until_ready(q2)
    assert jnp.allclose(q2, b2 - b1, atol=1e-6), "multi-block event mismatch"

    # --- ragged grid: rows=4104, block=544, grid=8 with masked last block --------
    rag_shape = (513, 1024)         # 525312 elements, rows % block_rows != 0
    r1 = jax.random.normal(keys[5], rag_shape, dtype=jnp.float32)
    r2 = jax.random.normal(keys[6], rag_shape, dtype=jnp.float32)
    gate_rag = Gate(min_pallas_size=0)
    _ = gate_rag(r1)
    s2 = gate_rag(r2)
    jax.block_until_ready(s2)
    assert jnp.allclose(s2, r2 - r1, atol=1e-6), "ragged-grid event mismatch"

    # --- bf16 path (rows=16, multiple of the 16-row bf16 tile) -------------------
    h1 = jax.random.normal(keys[7], shape, dtype=jnp.bfloat16)
    h2 = jax.random.normal(keys[8], shape, dtype=jnp.bfloat16)
    gate_bf16 = Gate(min_pallas_size=0)
    _ = gate_bf16(h1)
    t2 = gate_bf16(h2)
    jax.block_until_ready(t2)
    assert jnp.allclose(t2.astype(jnp.float32), (h2 - h1).astype(jnp.float32)), \
        "bf16 event mismatch"

    # --- unaligned size routes to the fused jnp fallback (no pad, no slice) ------
    odd_shape = (2, 3, 5, 7)        # 210 elements
    a1 = jax.random.normal(keys[9], odd_shape, dtype=jnp.float32)
    a2 = jax.random.normal(keys[10], odd_shape, dtype=jnp.float32)
    gate_odd = Gate(min_pallas_size=0)
    _ = gate_odd(a1)
    u2 = gate_odd(a2)
    jax.block_until_ready(u2)
    assert jnp.allclose(u2, a2 - a1, atol=1e-6), "unaligned fallback mismatch"

    # --- default (auto) dispatch uses the fused-jnp fallback at this small size --
    gate_auto = Gate()
    _ = gate_auto(x1)
    v2 = gate_auto(x2)
    jax.block_until_ready(v2)
    assert jnp.allclose(v2, x2 - x1, atol=1e-6), "jnp fallback mismatch"

    print("KERNEL_OK")
</pallas_src>

<mosaic_0001>
module attributes {stable_mosaic.version = 11 : i64} {
  func.func @_gate_event_kernel(%arg0: i32, %arg1: memref<16x128xf32, #tpu.memory_space<vmem>>, %arg2: memref<16x128xf32, #tpu.memory_space<vmem>>, %arg3: memref<16x128xf32, #tpu.memory_space<vmem>>) attributes {dimension_semantics = [#tpu.dimension_semantics<parallel>], iteration_bounds = array<i64: 1>, scalar_prefetch = 0 : i64, scratch_operands = 0 : i64, tpu.core_type = #tpu.core_type<tc>, window_params = [{transform_indices = @transform_0, window_bounds = array<i64: 16, 128>}, {transform_indices = @transform_1, window_bounds = array<i64: 16, 128>}, {transform_indices = @transform_2, window_bounds = array<i64: 16, 128>}]} {
    %c0 = arith.constant 0 : index
    %c0_0 = arith.constant 0 : index
    %0 = vector.load %arg1[%c0, %c0_0] : memref<16x128xf32, #tpu.memory_space<vmem>>, vector<16x128xf32>
    %c0_1 = arith.constant 0 : index
    %c0_2 = arith.constant 0 : index
    %1 = vector.load %arg2[%c0_1, %c0_2] : memref<16x128xf32, #tpu.memory_space<vmem>>, vector<16x128xf32>
    %2 = arith.subf %0, %1 : vector<16x128xf32>
    %c0_3 = arith.constant 0 : index
    %c0_4 = arith.constant 0 : index
    %3 = vector.load %arg3[%c0_3, %c0_4] : memref<16x128xf32, #tpu.memory_space<vmem>>, vector<16x128xf32>
    tpu.vector_store %arg3[%c0_3, %c0_4], %2 {strides = array<i32>} : memref<16x128xf32, #tpu.memory_space<vmem>>, vector<16x128xf32>,
    return
  }
  func.func @transform_0(%arg0: i32) -> (i32, i32) {
    %c0_i32 = arith.constant 0 : i32
    %c0_i32_0 = arith.constant 0 : i32
    return %arg0, %c0_i32 : i32, i32
  }
  func.func @transform_1(%arg0: i32) -> (i32, i32) {
    %c0_i32 = arith.constant 0 : i32
    %c0_i32_0 = arith.constant 0 : i32
    return %arg0, %c0_i32 : i32, i32
  }
  func.func @transform_2(%arg0: i32) -> (i32, i32) {
    %c0_i32 = arith.constant 0 : i32
    %c0_i32_0 = arith.constant 0 : i32
    return %arg0, %c0_i32 : i32, i32
  }
}

</mosaic_0001>

<llo_original>
// kernel: _gate_event_jit.1
$region0: #{_gate_event_jit.1}
  #allocation0 [shape = 'u32[]', space=smem, size = 0x4, offset = 0x4, fixed_abs, tag = 'smem constant byte address 0x4 - core index']
  #allocation1 [shape = 'u32[144,128]{1,0:T(1,128)}', space=vmem, size = 0x12000, scoped, tag = 'internal scratch']
  %s0 = inlined_call_operand.vmem [shape: f32[16,128], index: 0, kind: input, shape index: {}]
  %s1 = inlined_call_operand.vmem [shape: f32[16,128], index: 1, kind: input, shape index: {}]
  %s2 = inlined_call_operand.vmem [shape: f32[16,128], index: 2, kind: output, shape index: {}]
  %s3 = sld [smem:[#allocation0]]
  $region18: #{_gate_event_jit.1} parent=0
    _
  %s5 = ssub.s32 1, %s3
  %s6 = scalar_select 0, %s5, %s3
  // Predicated region
  $region2: #{_gate_event_jit.1} parent=0 // pred_check
    _
  $region3: #{_gate_event_jit.1} parent=0 // pred_check_branch
    %8 = sbr.rel (0) target = $region5
  $region4: #{_gate_event_jit.1} parent=0 // pred_region
    _
  $region5: #{_gate_event_jit.1} parent=0 // pred_fallthru
    _
  // Predicated region
  $region6: #{_gate_event_jit.1} parent=0 // pred_check
    _
  $region7: #{_gate_event_jit.1} parent=0 // pred_check_branch
    %10 = sbr.rel (0) target = $region9
  $region8: #{_gate_event_jit.1} parent=0 // pred_region
    _
  $region9: #{_gate_event_jit.1} parent=0 // pred_fallthru
    _
  %v11 = vld [vmem:[%s0] sm:$0xff]
  %v12 = vld [vmem:[%s0 + $0x8] sm:$0xff]
  %v13 = vld [vmem:[%s1] sm:$0xff]
  %v14 = vld [vmem:[%s1 + $0x8] sm:$0xff]
  %v15 = vsub.f32 %v11, %v13
  %v16 = vsub.f32 %v12, %v14
  %17 = vst [vmem:[%s2] sm:$0xff] %v15
  %18 = vst [vmem:[%s2 + $0x8] sm:$0xff] %v16
  // Predicated region
  $region10: #{_gate_event_jit.1} parent=0 // pred_check
    _
  $region11: #{_gate_event_jit.1} parent=0 // pred_check_branch
    %20 = sbr.rel (0) target = $region13
  $region12: #{_gate_event_jit.1} parent=0 // pred_region
    _
  $region13: #{_gate_event_jit.1} parent=0 // pred_fallthru
    _
  // Predicated region
  $region14: #{_gate_event_jit.1} parent=0 // pred_check
    _
  $region15: #{_gate_event_jit.1} parent=0 // pred_check_branch
    %22 = sbr.rel (0) target = $region17
  $region16: #{_gate_event_jit.1} parent=0 // pred_region
    _
  $region17: #{_gate_event_jit.1} parent=0 // pred_fallthru
    _

</llo_original>
